<compile_context>
chip_gen: v5e
topology: v5e:2x2
jax: 0.10.0
libtpu: 0.0.40
codegen_flags: <defaults>
</compile_context>

<pallas_src>
import jax
import jax.numpy as jnp
from jax.experimental import pallas as pl
from jax.experimental.pallas import tpu as pltpu


# ----------------------------------------------------------------------------
# Fused kernel: relation logits + token-binary-classification head
# ----------------------------------------------------------------------------
def fused_kernel(x_tile_ref, x_full_ref,
                 w_src_ref, b_src_ref, w_tgt_ref, b_tgt_ref, w_out_ref,
                 w_dense_ref, b_dense_ref, w_cls_ref, b_cls_ref,
                 rel_ref, mask_ref):
    """One (batch, source-tile) grid point.

    x_tile_ref  : (tq, H)      source rows of this tile
    x_full_ref  : (S, H)       full sequence (target rows)
    w_src_ref   : (H, R*H)     fused l_source weight (y = x @ W)
    b_src_ref   : (1, R*H)
    w_tgt_ref   : (H, R*H)     fused l_target weight
    b_tgt_ref   : (1, R*H)
    w_out_ref   : (1, H)       `out` linear (no bias)
    w_dense_ref : (H, T*H)     fused TokenBinaryClassificationHead dense weight
    b_dense_ref : (1, T*H)
    w_cls_ref   : (T*H, T)     block-diagonal classifier weight
    b_cls_ref   : (1, 1)
    rel_ref     : (R, tq, S)   relation logits [r, i_src, j_tgt]
    mask_ref    : (tq, T)      mask logits [s, t] (transposed to (T,S) in wrapper)
    """
    x_tile = x_tile_ref[...]                       # (tq, H)
    x_full = x_full_ref[...]                       # (S, H)
    H = x_tile.shape[1]
    R = rel_ref.shape[0]

    # ---- relation head: fused lane-dense projections (single MXU matmuls) ----
    hs_all = jnp.dot(x_tile, w_src_ref[...],
                     preferred_element_type=jnp.float32) + b_src_ref[...]   # (tq, R*H)
    ht_all = jnp.dot(x_full, w_tgt_ref[...],
                     preferred_element_type=jnp.float32) + b_tgt_ref[...]   # (S,  R*H)

    w_out_b = jnp.reshape(w_out_ref[...], (1, 1, H))   # hoisted out of the loop

    for r in range(R):                                 # static unroll, R is small
        hs_r = hs_all[:, r * H:(r + 1) * H]            # (tq, H) static slice
        ht_r = ht_all[:, r * H:(r + 1) * H]            # (S,  H)
        t = jnp.tanh(hs_r[:, None, :] + ht_r[None, :, :])      # (tq, S, H)
        rel_ref[r] = jnp.sum(t * w_out_b, axis=-1)              # (tq, S) direct write

    # ---- mask head: fused dense + block-diagonal MXU reduction ----
    hd = jnp.tanh(jnp.dot(x_tile, w_dense_ref[...],
                          preferred_element_type=jnp.float32) + b_dense_ref[...])  # (tq, T*H)
    mask_ref[...] = (jnp.dot(hd, w_cls_ref[...],
                             preferred_element_type=jnp.float32) + b_cls_ref[...])  # (tq, T)


# ----------------------------------------------------------------------------
# Wrapper
# ----------------------------------------------------------------------------
def baseline_model_forward(hidden_state, params, tile_q=None):
    """hidden_state: (B, S, H) f32 -> (relation_logits (B,R,S,S),
                                       source_mask_logits (B,T,S))"""
    B, S, H = hidden_state.shape
    R = params["w_src"].shape[0]
    T = params["w_dense"].shape[0]

    if tile_q is None:
        tile_q = S if S <= 128 or S % 128 != 0 else 128
    assert S % tile_q == 0, "sequence length must be divisible by the source tile"
    nq = S // tile_q

    f32 = jnp.float32
    # Fuse per-relation / per-task weights into single lane-dense matmuls:
    # (x @ W_all)[:, r*H:(r+1)*H] == x @ w[r]
    w_src_all = jnp.transpose(params["w_src"], (1, 0, 2)).reshape(H, R * H).astype(f32)
    b_src_all = params["b_src"].reshape(1, R * H).astype(f32)
    w_tgt_all = jnp.transpose(params["w_tgt"], (1, 0, 2)).reshape(H, R * H).astype(f32)
    b_tgt_all = params["b_tgt"].reshape(1, R * H).astype(f32)
    w_dense_all = jnp.transpose(params["w_dense"], (1, 0, 2)).reshape(H, T * H).astype(f32)
    b_dense_all = params["b_dense"].reshape(1, T * H).astype(f32)
    # block-diagonal classifier: (T*H, T), column t carries w_cls in rows t*H..t*H+H
    w_cls_big = jnp.einsum("tu,h->thu", jnp.eye(T, dtype=f32),
                           params["w_cls"][0].astype(f32)).reshape(T * H, T)

    rel_out, mask_out = pl.pallas_call(
        fused_kernel,
        out_shape=(jax.ShapeDtypeStruct((B, R, S, S), jnp.float32),
                   jax.ShapeDtypeStruct((B, S, T), jnp.float32)),
        grid=(B, nq),
        in_specs=[
            pl.BlockSpec((None, tile_q, H), lambda b, q: (b, q, 0)),   # source tile
            pl.BlockSpec((None, S, H), lambda b, q: (b, 0, 0)),        # full sequence
            pl.BlockSpec((H, R * H), lambda b, q: (0, 0)),
            pl.BlockSpec((1, R * H), lambda b, q: (0, 0)),
            pl.BlockSpec((H, R * H), lambda b, q: (0, 0)),
            pl.BlockSpec((1, R * H), lambda b, q: (0, 0)),
            pl.BlockSpec((1, H), lambda b, q: (0, 0)),
            pl.BlockSpec((H, T * H), lambda b, q: (0, 0)),
            pl.BlockSpec((1, T * H), lambda b, q: (0, 0)),
            pl.BlockSpec((T * H, T), lambda b, q: (0, 0)),
            pl.BlockSpec((1, 1), lambda b, q: (0, 0)),
        ],
        out_specs=(
            pl.BlockSpec((None, R, tile_q, S), lambda b, q: (b, 0, q, 0)),
            pl.BlockSpec((None, tile_q, T), lambda b, q: (b, q, 0)),
        ),
        compiler_params=pltpu.CompilerParams(
            dimension_semantics=("parallel", "parallel"),
            vmem_limit_bytes=32 * 1024 * 1024),
    )(hidden_state, hidden_state,
      w_src_all, b_src_all, w_tgt_all, b_tgt_all, params["w_out"].astype(f32),
      w_dense_all, b_dense_all, w_cls_big, params["b_cls"].astype(f32))

    relation_logits = rel_out                                   # (B, R, S, S)
    source_mask_logits = jnp.transpose(mask_out, (0, 2, 1))     # (B, T, S)
    return relation_logits, source_mask_logits


# ----------------------------------------------------------------------------
# Pure-JAX reference (for correctness check)
# ----------------------------------------------------------------------------
def reference_forward(hidden_state, p):
    hp = jax.lax.Precision.HIGHEST
    hs = jnp.einsum("bsh,rhk->bsrk", hidden_state, p["w_src"],
                    precision=hp) + p["b_src"][None, None]
    ht = jnp.einsum("bsh,rhk->bsrk", hidden_state, p["w_tgt"],
                    precision=hp) + p["b_tgt"][None, None]
    h = jnp.tanh(hs[:, :, None] + ht[:, None, :])                  # (B,S,S,R,H)
    rel = jnp.einsum("bijrh,h->brij", h, p["w_out"][0], precision=hp)

    hd = jnp.tanh(jnp.einsum("bsh,thk->bstk", hidden_state, p["w_dense"],
                             precision=hp) + p["b_dense"][None, None])
    mask = jnp.einsum("bstk,k->bts", hd, p["w_cls"][0], precision=hp) + p["b_cls"][0, 0]
    return rel, mask


# ----------------------------------------------------------------------------
# Main
# ----------------------------------------------------------------------------
if __name__ == "__main__":
    # TODO(synk): the pretrained transformer encoder (AutoModel) is not
    # translated; the kernel consumes its last_hidden_state directly.
    B, S, H = 2, 8, 32          # batch, sequence, encoder hidden size
    R = 4                       # num_relations
    T = 3                       # num_tasks

    key = jax.random.PRNGKey(0)
    keys = jax.random.split(key, 10)
    scale = float(1.0 / (H ** 0.5))

    params = {
        # per-relation weights, stored so that y_r = x @ w[r] + b[r]
        "w_src": jax.random.uniform(keys[0], (R, H, H), jnp.float32, -scale, scale),
        "b_src": jax.random.uniform(keys[1], (R, H), jnp.float32, -scale, scale),
        "w_tgt": jax.random.uniform(keys[2], (R, H, H), jnp.float32, -scale, scale),
        "b_tgt": jax.random.uniform(keys[3], (R, H), jnp.float32, -scale, scale),
        "w_out": jax.random.uniform(keys[4], (1, H), jnp.float32, -scale, scale),
        # TokenBinaryClassificationHead
        "w_dense": jax.random.uniform(keys[5], (T, H, H), jnp.float32, -scale, scale),
        "b_dense": jax.random.uniform(keys[6], (T, H), jnp.float32, -scale, scale),
        "w_cls": jax.random.uniform(keys[7], (1, H), jnp.float32, -scale, scale),
        "b_cls": jax.random.uniform(keys[8], (1, 1), jnp.float32, -scale, scale),
    }

    hidden_state = jax.random.normal(keys[9], (B, S, H), jnp.float32)

    rel_logits, mask_logits = baseline_model_forward(hidden_state, params)
    jax.block_until_ready((rel_logits, mask_logits))

    rel_ref, mask_ref = reference_forward(hidden_state, params)
    assert rel_logits.shape == (B, R, S, S)
    assert mask_logits.shape == (B, T, S)
    assert jnp.allclose(rel_logits, rel_ref, rtol=1e-3, atol=1e-3)
    assert jnp.allclose(mask_logits, mask_ref, rtol=1e-3, atol=1e-3)

    print("KERNEL_OK")
</pallas_src>

<mosaic_0001>
module attributes {stable_mosaic.version = 11 : i64} {
  func.func @fused_kernel(%arg0: i32, %arg1: i32, %arg2: memref<1x8x32xf32, #tpu.memory_space<vmem>>, %arg3: memref<1x8x32xf32, #tpu.memory_space<vmem>>, %arg4: memref<32x128xf32, #tpu.memory_space<vmem>>, %arg5: memref<1x128xf32, #tpu.memory_space<vmem>>, %arg6: memref<32x128xf32, #tpu.memory_space<vmem>>, %arg7: memref<1x128xf32, #tpu.memory_space<vmem>>, %arg8: memref<1x32xf32, #tpu.memory_space<vmem>>, %arg9: memref<32x96xf32, #tpu.memory_space<vmem>>, %arg10: memref<1x96xf32, #tpu.memory_space<vmem>>, %arg11: memref<96x3xf32, #tpu.memory_space<vmem>>, %arg12: memref<1x1xf32, #tpu.memory_space<vmem>>, %arg13: memref<1x4x8x8xf32, #tpu.memory_space<vmem>>, %arg14: memref<1x8x3xf32, #tpu.memory_space<vmem>>) attributes {dimension_semantics = [#tpu.dimension_semantics<parallel>, #tpu.dimension_semantics<parallel>], iteration_bounds = array<i64: 2, 1>, scalar_prefetch = 0 : i64, scratch_operands = 0 : i64, tpu.core_type = #tpu.core_type<tc>, window_params = [{transform_indices = @transform_0, window_bounds = array<i64: 1, 8, 32>}, {transform_indices = @transform_1, window_bounds = array<i64: 1, 8, 32>}, {pipeline_mode = #tpu.pipeline_mode<synchronous>, transform_indices = @transform_2, window_bounds = array<i64: 32, 128>}, {pipeline_mode = #tpu.pipeline_mode<synchronous>, transform_indices = @transform_3, window_bounds = array<i64: 1, 128>}, {pipeline_mode = #tpu.pipeline_mode<synchronous>, transform_indices = @transform_4, window_bounds = array<i64: 32, 128>}, {pipeline_mode = #tpu.pipeline_mode<synchronous>, transform_indices = @transform_5, window_bounds = array<i64: 1, 128>}, {pipeline_mode = #tpu.pipeline_mode<synchronous>, transform_indices = @transform_6, window_bounds = array<i64: 1, 32>}, {pipeline_mode = #tpu.pipeline_mode<synchronous>, transform_indices = @transform_7, window_bounds = array<i64: 32, 96>}, {pipeline_mode = #tpu.pipeline_mode<synchronous>, transform_indices = @transform_8, window_bounds = array<i64: 1, 96>}, {pipeline_mode = #tpu.pipeline_mode<synchronous>, transform_indices = @transform_9, window_bounds = array<i64: 96, 3>}, {pipeline_mode = #tpu.pipeline_mode<synchronous>, transform_indices = @transform_10, window_bounds = array<i64: 1, 1>}, {transform_indices = @transform_11, window_bounds = array<i64: 1, 4, 8, 8>}, {transform_indices = @transform_12, window_bounds = array<i64: 1, 8, 3>}]} {
    %c0 = arith.constant 0 : index
    %c0_0 = arith.constant 0 : index
    %c0_1 = arith.constant 0 : index
    %0 = vector.load %arg2[%c0, %c0_0, %c0_1] : memref<1x8x32xf32, #tpu.memory_space<vmem>>, vector<1x8x32xf32>
    %1 = vector.shape_cast %0 : vector<1x8x32xf32> to vector<8x32xf32>
    %c0_2 = arith.constant 0 : index
    %c0_3 = arith.constant 0 : index
    %c0_4 = arith.constant 0 : index
    %2 = vector.load %arg3[%c0_2, %c0_3, %c0_4] : memref<1x8x32xf32, #tpu.memory_space<vmem>>, vector<1x8x32xf32>
    %3 = vector.shape_cast %2 : vector<1x8x32xf32> to vector<8x32xf32>
    %c0_5 = arith.constant 0 : index
    %c0_6 = arith.constant 0 : index
    %4 = vector.load %arg4[%c0_5, %c0_6] : memref<32x128xf32, #tpu.memory_space<vmem>>, vector<32x128xf32>
    %cst = arith.constant dense<0.000000e+00> : vector<8x128xf32>
    %5 = tpu.matmul %1, %4, %cst {dimension_numbers = #tpu.dot_dimension_numbers<[1], [0], [0], [1], [0, 0, 1, 1], [], []>} : vector<8x32xf32>, vector<32x128xf32>, vector<8x128xf32> -> vector<8x128xf32>
    %c0_7 = arith.constant 0 : index
    %c0_8 = arith.constant 0 : index
    %6 = vector.load %arg5[%c0_7, %c0_8] : memref<1x128xf32, #tpu.memory_space<vmem>>, vector<1x128xf32>
    %7 = vector.broadcast %6 : vector<1x128xf32> to vector<8x128xf32>
    %8 = arith.addf %5, %7 : vector<8x128xf32>
    %c0_9 = arith.constant 0 : index
    %c0_10 = arith.constant 0 : index
    %9 = vector.load %arg6[%c0_9, %c0_10] : memref<32x128xf32, #tpu.memory_space<vmem>>, vector<32x128xf32>
    %cst_11 = arith.constant dense<0.000000e+00> : vector<8x128xf32>
    %10 = tpu.matmul %3, %9, %cst_11 {dimension_numbers = #tpu.dot_dimension_numbers<[1], [0], [0], [1], [0, 0, 1, 1], [], []>} : vector<8x32xf32>, vector<32x128xf32>, vector<8x128xf32> -> vector<8x128xf32>
    %c0_12 = arith.constant 0 : index
    %c0_13 = arith.constant 0 : index
    %11 = vector.load %arg7[%c0_12, %c0_13] : memref<1x128xf32, #tpu.memory_space<vmem>>, vector<1x128xf32>
    %12 = vector.broadcast %11 : vector<1x128xf32> to vector<8x128xf32>
    %13 = arith.addf %10, %12 : vector<8x128xf32>
    %c0_14 = arith.constant 0 : index
    %c0_15 = arith.constant 0 : index
    %14 = vector.load %arg8[%c0_14, %c0_15] : memref<1x32xf32, #tpu.memory_space<vmem>>, vector<1x32xf32>
    %15 = vector.shape_cast %14 : vector<1x32xf32> to vector<1x1x32xf32>
    %16 = vector.extract_strided_slice %8 {offsets = [0, 0], sizes = [8, 32], strides = [1, 1]} : vector<8x128xf32> to vector<8x32xf32>
    %17 = vector.extract_strided_slice %13 {offsets = [0, 0], sizes = [8, 32], strides = [1, 1]} : vector<8x128xf32> to vector<8x32xf32>
    %18 = vector.shape_cast %16 : vector<8x32xf32> to vector<8x1x32xf32>
    %19 = vector.shape_cast %17 : vector<8x32xf32> to vector<1x8x32xf32>
    %20 = vector.broadcast %18 : vector<8x1x32xf32> to vector<8x8x32xf32>
    %21 = vector.broadcast %19 : vector<1x8x32xf32> to vector<8x8x32xf32>
    %22 = arith.addf %20, %21 : vector<8x8x32xf32>
    %23 = math.tanh %22 : vector<8x8x32xf32>
    %24 = vector.broadcast %15 : vector<1x1x32xf32> to vector<8x8x32xf32>
    %25 = arith.mulf %23, %24 : vector<8x8x32xf32>
    %cst_16 = arith.constant dense<0.000000e+00> : vector<8x8xf32>
    %26 = vector.multi_reduction <add>, %25, %cst_16 [2] : vector<8x8x32xf32> to vector<8x8xf32>
    %c0_17 = arith.constant 0 : index
    %c0_18 = arith.constant 0 : index
    %c0_19 = arith.constant 0 : index
    %c0_20 = arith.constant 0 : index
    %27 = vector.load %arg13[%c0_17, %c0_18, %c0_19, %c0_20] : memref<1x4x8x8xf32, #tpu.memory_space<vmem>>, vector<1x1x8x8xf32>
    %28 = vector.shape_cast %27 : vector<1x1x8x8xf32> to vector<8x8xf32>
    %29 = vector.shape_cast %26 : vector<8x8xf32> to vector<1x1x8x8xf32>
    tpu.vector_store %arg13[%c0_17, %c0_18, %c0_19, %c0_20], %29 {strides = array<i32>} : memref<1x4x8x8xf32, #tpu.memory_space<vmem>>, vector<1x1x8x8xf32>,
    %30 = vector.extract_strided_slice %8 {offsets = [0, 32], sizes = [8, 32], strides = [1, 1]} : vector<8x128xf32> to vector<8x32xf32>
    %31 = vector.extract_strided_slice %13 {offsets = [0, 32], sizes = [8, 32], strides = [1, 1]} : vector<8x128xf32> to vector<8x32xf32>
    %32 = vector.shape_cast %30 : vector<8x32xf32> to vector<8x1x32xf32>
    %33 = vector.shape_cast %31 : vector<8x32xf32> to vector<1x8x32xf32>
    %34 = vector.broadcast %32 : vector<8x1x32xf32> to vector<8x8x32xf32>
    %35 = vector.broadcast %33 : vector<1x8x32xf32> to vector<8x8x32xf32>
    %36 = arith.addf %34, %35 : vector<8x8x32xf32>
    %37 = math.tanh %36 : vector<8x8x32xf32>
    %38 = vector.broadcast %15 : vector<1x1x32xf32> to vector<8x8x32xf32>
    %39 = arith.mulf %37, %38 : vector<8x8x32xf32>
    %cst_21 = arith.constant dense<0.000000e+00> : vector<8x8xf32>
    %40 = vector.multi_reduction <add>, %39, %cst_21 [2] : vector<8x8x32xf32> to vector<8x8xf32>
    %c0_22 = arith.constant 0 : index
    %c1 = arith.constant 1 : index
    %c0_23 = arith.constant 0 : index
    %c0_24 = arith.constant 0 : index
    %41 = vector.load %arg13[%c0_22, %c1, %c0_23, %c0_24] : memref<1x4x8x8xf32, #tpu.memory_space<vmem>>, vector<1x1x8x8xf32>
    %42 = vector.shape_cast %41 : vector<1x1x8x8xf32> to vector<8x8xf32>
    %43 = vector.shape_cast %40 : vector<8x8xf32> to vector<1x1x8x8xf32>
    tpu.vector_store %arg13[%c0_22, %c1, %c0_23, %c0_24], %43 {strides = array<i32>} : memref<1x4x8x8xf32, #tpu.memory_space<vmem>>, vector<1x1x8x8xf32>,
    %44 = vector.extract_strided_slice %8 {offsets = [0, 64], sizes = [8, 32], strides = [1, 1]} : vector<8x128xf32> to vector<8x32xf32>
    %45 = vector.extract_strided_slice %13 {offsets = [0, 64], sizes = [8, 32], strides = [1, 1]} : vector<8x128xf32> to vector<8x32xf32>
    %46 = vector.shape_cast %44 : vector<8x32xf32> to vector<8x1x32xf32>
    %47 = vector.shape_cast %45 : vector<8x32xf32> to vector<1x8x32xf32>
    %48 = vector.broadcast %46 : vector<8x1x32xf32> to vector<8x8x32xf32>
    %49 = vector.broadcast %47 : vector<1x8x32xf32> to vector<8x8x32xf32>
    %50 = arith.addf %48, %49 : vector<8x8x32xf32>
    %51 = math.tanh %50 : vector<8x8x32xf32>
    %52 = vector.broadcast %15 : vector<1x1x32xf32> to vector<8x8x32xf32>
    %53 = arith.mulf %51, %52 : vector<8x8x32xf32>
    %cst_25 = arith.constant dense<0.000000e+00> : vector<8x8xf32>
    %54 = vector.multi_reduction <add>, %53, %cst_25 [2] : vector<8x8x32xf32> to vector<8x8xf32>
    %c0_26 = arith.constant 0 : index
    %c2 = arith.constant 2 : index
    %c0_27 = arith.constant 0 : index
    %c0_28 = arith.constant 0 : index
    %55 = vector.load %arg13[%c0_26, %c2, %c0_27, %c0_28] : memref<1x4x8x8xf32, #tpu.memory_space<vmem>>, vector<1x1x8x8xf32>
    %56 = vector.shape_cast %55 : vector<1x1x8x8xf32> to vector<8x8xf32>
    %57 = vector.shape_cast %54 : vector<8x8xf32> to vector<1x1x8x8xf32>
    tpu.vector_store %arg13[%c0_26, %c2, %c0_27, %c0_28], %57 {strides = array<i32>} : memref<1x4x8x8xf32, #tpu.memory_space<vmem>>, vector<1x1x8x8xf32>,
    %58 = vector.extract_strided_slice %8 {offsets = [0, 96], sizes = [8, 32], strides = [1, 1]} : vector<8x128xf32> to vector<8x32xf32>
    %59 = vector.extract_strided_slice %13 {offsets = [0, 96], sizes = [8, 32], strides = [1, 1]} : vector<8x128xf32> to vector<8x32xf32>
    %60 = vector.shape_cast %58 : vector<8x32xf32> to vector<8x1x32xf32>
    %61 = vector.shape_cast %59 : vector<8x32xf32> to vector<1x8x32xf32>
    %62 = vector.broadcast %60 : vector<8x1x32xf32> to vector<8x8x32xf32>
    %63 = vector.broadcast %61 : vector<1x8x32xf32> to vector<8x8x32xf32>
    %64 = arith.addf %62, %63 : vector<8x8x32xf32>
    %65 = math.tanh %64 : vector<8x8x32xf32>
    %66 = vector.broadcast %15 : vector<1x1x32xf32> to vector<8x8x32xf32>
    %67 = arith.mulf %65, %66 : vector<8x8x32xf32>
    %cst_29 = arith.constant dense<0.000000e+00> : vector<8x8xf32>
    %68 = vector.multi_reduction <add>, %67, %cst_29 [2] : vector<8x8x32xf32> to vector<8x8xf32>
    %c0_30 = arith.constant 0 : index
    %c3 = arith.constant 3 : index
    %c0_31 = arith.constant 0 : index
    %c0_32 = arith.constant 0 : index
    %69 = vector.load %arg13[%c0_30, %c3, %c0_31, %c0_32] : memref<1x4x8x8xf32, #tpu.memory_space<vmem>>, vector<1x1x8x8xf32>
    %70 = vector.shape_cast %69 : vector<1x1x8x8xf32> to vector<8x8xf32>
    %71 = vector.shape_cast %68 : vector<8x8xf32> to vector<1x1x8x8xf32>
    tpu.vector_store %arg13[%c0_30, %c3, %c0_31, %c0_32], %71 {strides = array<i32>} : memref<1x4x8x8xf32, #tpu.memory_space<vmem>>, vector<1x1x8x8xf32>,
    %c0_33 = arith.constant 0 : index
    %c0_34 = arith.constant 0 : index
    %72 = vector.load %arg9[%c0_33, %c0_34] : memref<32x96xf32, #tpu.memory_space<vmem>>, vector<32x96xf32>
    %cst_35 = arith.constant dense<0.000000e+00> : vector<8x96xf32>
    %73 = tpu.matmul %1, %72, %cst_35 {dimension_numbers = #tpu.dot_dimension_numbers<[1], [0], [0], [1], [0, 0, 1, 1], [], []>} : vector<8x32xf32>, vector<32x96xf32>, vector<8x96xf32> -> vector<8x96xf32>
    %c0_36 = arith.constant 0 : index
    %c0_37 = arith.constant 0 : index
    %74 = vector.load %arg10[%c0_36, %c0_37] : memref<1x96xf32, #tpu.memory_space<vmem>>, vector<1x96xf32>
    %75 = vector.broadcast %74 : vector<1x96xf32> to vector<8x96xf32>
    %76 = arith.addf %73, %75 : vector<8x96xf32>
    %77 = math.tanh %76 : vector<8x96xf32>
    %c0_38 = arith.constant 0 : index
    %c0_39 = arith.constant 0 : index
    %78 = vector.load %arg11[%c0_38, %c0_39] : memref<96x3xf32, #tpu.memory_space<vmem>>, vector<96x3xf32>
    %cst_40 = arith.constant dense<0.000000e+00> : vector<8x3xf32>
    %79 = tpu.matmul %77, %78, %cst_40 {dimension_numbers = #tpu.dot_dimension_numbers<[1], [0], [0], [1], [0, 0, 1, 1], [], []>} : vector<8x96xf32>, vector<96x3xf32>, vector<8x3xf32> -> vector<8x3xf32>
    %c0_41 = arith.constant 0 : index
    %c0_42 = arith.constant 0 : index
    %80 = vector.load %arg12[%c0_41, %c0_42] : memref<1x1xf32, #tpu.memory_space<vmem>>, vector<1x1xf32>
    %81 = vector.broadcast %80 : vector<1x1xf32> to vector<8x3xf32>
    %82 = arith.addf %79, %81 : vector<8x3xf32>
    %c0_43 = arith.constant 0 : index
    %c0_44 = arith.constant 0 : index
    %c0_45 = arith.constant 0 : index
    %83 = vector.load %arg14[%c0_43, %c0_44, %c0_45] : memref<1x8x3xf32, #tpu.memory_space<vmem>>, vector<1x8x3xf32>
    %84 = vector.shape_cast %83 : vector<1x8x3xf32> to vector<8x3xf32>
    %85 = vector.shape_cast %82 : vector<8x3xf32> to vector<1x8x3xf32>
    tpu.vector_store %arg14[%c0_43, %c0_44, %c0_45], %85 {strides = array<i32>} : memref<1x8x3xf32, #tpu.memory_space<vmem>>, vector<1x8x3xf32>,
    return
  }
  func.func @transform_0(%arg0: i32, %arg1: i32) -> (i32, i32, i32) {
    %c0_i32 = arith.constant 0 : i32
    %c0_i32_0 = arith.constant 0 : i32
    return %arg0, %arg1, %c0_i32 : i32, i32, i32
  }
  func.func @transform_1(%arg0: i32, %arg1: i32) -> (i32, i32, i32) {
    %c0_i32 = arith.constant 0 : i32
    %c0_i32_0 = arith.constant 0 : i32
    %c0_i32_1 = arith.constant 0 : i32
    return %arg0, %c0_i32, %c0_i32_0 : i32, i32, i32
  }
  func.func @transform_2(%arg0: i32, %arg1: i32) -> (i32, i32) {
    %c0_i32 = arith.constant 0 : i32
    %c0_i32_0 = arith.constant 0 : i32
    %c0_i32_1 = arith.constant 0 : i32
    return %c0_i32, %c0_i32_0 : i32, i32
  }
  func.func @transform_3(%arg0: i32, %arg1: i32) -> (i32, i32) {
    %c0_i32 = arith.constant 0 : i32
    %c0_i32_0 = arith.constant 0 : i32
    %c0_i32_1 = arith.constant 0 : i32
    return %c0_i32, %c0_i32_0 : i32, i32
  }
  func.func @transform_4(%arg0: i32, %arg1: i32) -> (i32, i32) {
    %c0_i32 = arith.constant 0 : i32
    %c0_i32_0 = arith.constant 0 : i32
    %c0_i32_1 = arith.constant 0 : i32
    return %c0_i32, %c0_i32_0 : i32, i32
  }
  func.func @transform_5(%arg0: i32, %arg1: i32) -> (i32, i32) {
    %c0_i32 = arith.constant 0 : i32
    %c0_i32_0 = arith.constant 0 : i32
    %c0_i32_1 = arith.constant 0 : i32
    return %c0_i32, %c0_i32_0 : i32, i32
  }
  func.func @transform_6(%arg0: i32, %arg1: i32) -> (i32, i32) {
    %c0_i32 = arith.constant 0 : i32
    %c0_i32_0 = arith.constant 0 : i32
    %c0_i32_1 = arith.constant 0 : i32
    return %c0_i32, %c0_i32_0 : i32, i32
  }
  func.func @transform_7(%arg0: i32, %arg1: i32) -> (i32, i32) {
    %c0_i32 = arith.constant 0 : i32
    %c0_i32_0 = arith.constant 0 : i32
    %c0_i32_1 = arith.constant 0 : i32
    return %c0_i32, %c0_i32_0 : i32, i32
  }
  func.func @transform_8(%arg0: i32, %arg1: i32) -> (i32, i32) {
    %c0_i32 = arith.constant 0 : i32
    %c0_i32_0 = arith.constant 0 : i32
    %c0_i32_1 = arith.constant 0 : i32
    return %c0_i32, %c0_i32_0 : i32, i32
  }
  func.func @transform_9(%arg0: i32, %arg1: i32) -> (i32, i32) {
    %c0_i32 = arith.constant 0 : i32
    %c0_i32_0 = arith.constant 0 : i32
    %c0_i32_1 = arith.constant 0 : i32
    return %c0_i32, %c0_i32_0 : i32, i32
  }
  func.func @transform_10(%arg0: i32, %arg1: i32) -> (i32, i32) {
    %c0_i32 = arith.constant 0 : i32
    %c0_i32_0 = arith.constant 0 : i32
    %c0_i32_1 = arith.constant 0 : i32
    return %c0_i32, %c0_i32_0 : i32, i32
  }
  func.func @transform_11(%arg0: i32, %arg1: i32) -> (i32, i32, i32, i32) {
    %c0_i32 = arith.constant 0 : i32
    %c0_i32_0 = arith.constant 0 : i32
    %c0_i32_1 = arith.constant 0 : i32
    return %arg0, %c0_i32, %arg1, %c0_i32_0 : i32, i32, i32, i32
  }
  func.func @transform_12(%arg0: i32, %arg1: i32) -> (i32, i32, i32) {
    %c0_i32 = arith.constant 0 : i32
    %c0_i32_0 = arith.constant 0 : i32
    return %arg0, %arg1, %c0_i32 : i32, i32, i32
  }
}

</mosaic_0001>

<llo_original>
// kernel: tpu_custom_call.1
$region0: #{tpu_custom_call.1}
  #allocation0 [shape = 'u32[]', space=smem, size = 0x4, offset = 0x4, fixed_abs, tag = 'smem constant byte address 0x4 - core index']
  #allocation1 [shape = 'u32[72,128]{1,0:T(1,128)}', space=vmem, size = 0x9000, scoped, tag = 'internal scratch']
  #allocation2 [shape = 'f32[1,1]{1,0:T(1,128)S(1)}', space=vmem, size = 0x200, scoped, tag = 'scoped memory for tpu_custom_call.1']
  %s0 = inlined_call_operand.hbm [shape: f32[2,8,32], index: 0, kind: input, shape index: {}]
  %s1 = inlined_call_operand.hbm [shape: f32[2,8,32], index: 1, kind: input, shape index: {}]
  %s2 = inlined_call_operand.vmem [shape: f32[32,128], index: 2, kind: input, shape index: {}]
  %s3 = inlined_call_operand.vmem [shape: f32[1,128], index: 3, kind: input, shape index: {}]
  %s4 = inlined_call_operand.vmem [shape: f32[32,128], index: 4, kind: input, shape index: {}]
  %s5 = inlined_call_operand.vmem [shape: f32[1,128], index: 5, kind: input, shape index: {}]
  %s6 = inlined_call_operand.vmem [shape: f32[1,32], index: 6, kind: input, shape index: {}]
  %s7 = inlined_call_operand.vmem [shape: f32[32,96], index: 7, kind: input, shape index: {}]
  %s8 = inlined_call_operand.vmem [shape: f32[1,96], index: 8, kind: input, shape index: {}]
  %s9 = inlined_call_operand.vmem [shape: f32[96,3], index: 9, kind: input, shape index: {}]
  %s10 = inlined_call_operand.<no memory space> [shape: f32[1,1], index: 10, kind: input, shape index: {}]
  %s11 = inlined_call_operand.hbm [shape: f32[2,4,8,8], index: 11, kind: output, shape index: {0}]
  %s12 = inlined_call_operand.vmem [shape: f32[2,8,3], index: 12, kind: output, shape index: {1}]
  %13 = xla_tuple %s11, %s12
  %s14 = sld [smem:[#allocation0]]
  $region93: #{tpu_custom_call.1} parent=0
    _
  %s16 = ssub.s32 1, %s14
  %s17 = scalar_select 0, %s16, %s14
  %v18 = vstv %s10
  %19 = vst [vmem:[#allocation2] sm:$0x1] %v18
  $region1: #{tpu_custom_call.1} parent=0
    #allocation3 [shape = 'u8[8192]{0}', space=vmem, size = 0x2000, scoped, tag = 'input window, operand 0']
    #allocation4 [shape = 's32[2]{0}', space=sflag, size = 0x8, scoped, tag = 'scoped memory for tpu_custom_call.1']
    #allocation5 [shape = 's32[2]{0}', space=sflag, size = 0x8, scoped, tag = 'scoped memory for tpu_custom_call.1']
    #allocation6 [shape = 'u8[8192]{0}', space=vmem, size = 0x2000, scoped, tag = 'input window, operand 1']
    #allocation7 [shape = 's32[2]{0}', space=sflag, size = 0x8, scoped, tag = 'scoped memory for tpu_custom_call.1']
    #allocation8 [shape = 'u8[32768]{0}', space=vmem, size = 0x8000, scoped, tag = 'output window, operand 0']
    %20 = vsyncpa [#allocation4], 0
    %s21 = scalar_lea.sflag [#allocation4], 1
    %22 = vsyncpa %s21, 0
    %23 = vsyncpa [#allocation7], 0
    %s24 = scalar_lea.sflag [#allocation7], 1
    %25 = vsyncpa %s24, 0
    %26 = vsyncpa [#allocation5], 0
    %s27 = scalar_lea.sflag [#allocation5], 1
    %28 = vsyncpa %s27, 0
    loop: start=0, step=1, limit=4
    $region2: #{tpu_custom_call.1} parent=1 // loop_pre_header
      _
    $region3: #{tpu_custom_call.1} parent=1 // loop_header
      %s30 = sphi 0, %s34
      %p31 = scmp.ge.s32.totalorder %s30, 4
      %s37 = sphi 0, %s49
      %s38 = sphi 0, %s45
      %s39 = sphi 0, %s37
      %s40 = sphi 0, %s38
      %s41 = sphi 0, %s39
      %s42 = sphi 0, %s40
      %s54 = sphi 0, %s56
      %s57 = sphi 0, %s54
      %s58 = sphi 0, %s57
      %s74 = sphi 0, %s58
      %s80 = sphi 0, %s82
      %s83 = sphi 0, %s80
      %s84 = sphi 0, %s83
      %s100 = sphi 0, %s84
      %s104 = sphi 0, %s104
      %s106 = sphi 0, %s104
      %s107 = sphi 0, %s106
      %s121 = sphi 0, %s107
      %s125 = sphi 0, %s125
      %s127 = sphi 0, %s125
      %s128 = sphi 0, %s127
      %s142 = sphi 0, %s128
      %s146 = sphi 0, %s146
      %s148 = sphi 0, %s146
      %s149 = sphi 0, %s148
      %s163 = sphi 0, %s149
      %s167 = sphi 0, %s167
      %s169 = sphi 0, %s167
      %s170 = sphi 0, %s169
      %s184 = sphi 0, %s170
      %s188 = sphi 0, %s188
      %s190 = sphi 0, %s188
      %s191 = sphi 0, %s190
      %s205 = sphi 0, %s191
      %s209 = sphi 0, %s209
      %s211 = sphi 0, %s209
      %s212 = sphi 0, %s211
      %s226 = sphi 0, %s212
      %s230 = sphi 0, %s230
      %s232 = sphi 0, %s230
      %s233 = sphi 0, %s232
      %s247 = sphi 0, %s233
      %s251 = sphi 0, %s251
      %s253 = sphi 0, %s251
      %s254 = sphi 0, %s253
      %s268 = sphi 0, %s254
      %s272 = sphi 0, %s272
      %s274 = sphi 0, %s272
      %s275 = sphi 0, %s274
      %s289 = sphi 0, %s275
      %s297 = sphi 0, %s299
      %s300 = sphi 0, %s297
      %s301 = sphi 0, %s300
      %s317 = sphi 0, %s301
      %s325 = sphi 0, %s327
      %s328 = sphi 0, %s325
      %s329 = sphi 0, %s328
      %s345 = sphi 0, %s329
    $region4: #{tpu_custom_call.1} parent=1 // loop_header_branch
      %33 = sbr.rel (%p31) target = $region8
    $region5: #{tpu_custom_call.1} parent=1 // loop_body
      %s35 = ssub.s32 %s30, 1
      %s36 = ssub.s32 %s30, 2
      %s43 = sadd.s32 1, %s38
      %p44 = scmp.ge.s32.totalorder %s43, 1
      %s45 = scalar_select %p44, 0, %s43
      %s46 = sadd.s32 1, %s37
      %s47 = scalar_select %p44, %s46, %s37
      %p48 = scmp.ge.s32.totalorder %s47, 2
      %s49 = scalar_select %p48, 0, %s47
      %s50 = ssub.s32 %s37, %s49
      %s51 = ssub.s32 %s38, %s45
      %s52 = sor.u32 %s50, %s51
      %p53 = scmp.eq.s32.totalorder %s52, 0
      %s55 = sadd.s32 %s54, 1
      %s56 = scalar_select %p53, %s54, %s55
      %p59 = pneg %p53
      %p60 = scmp.eq.s32.totalorder %s30, 1
      %p61 = por %p59, %p60
      %p62 = scmp.ne.s32.totalorder %s54, %s57
      %p63 = scmp.eq.s32.totalorder %s30, 0
      %p64 = por %p62, %p63
      %p65 = scmp.ne.s32.totalorder %s54, %s57
      %p66 = scmp.eq.s32.totalorder %s35, 1
      %p67 = por %p65, %p66
      %p68 = scmp.ne.s32.totalorder %s57, %s58
      %p69 = scmp.eq.s32.totalorder %s35, 0
      %p70 = por %p68, %p69
      %p71 = scmp.ne.s32.totalorder %s57, %s58
      %p72 = scmp.eq.s32.totalorder %s36, 1
      %p73 = por %p71, %p72
      %p75 = scmp.ne.s32.totalorder %s58, %s74
      %p76 = scmp.eq.s32.totalorder %s36, 0
      %p77 = por %p75, %p76
      %s78 = ssub.s32 %s37, %s49
      %p79 = scmp.eq.s32.totalorder %s78, 0
      %s81 = sadd.s32 %s80, 1
      %s82 = scalar_select %p79, %s80, %s81
      %p85 = pneg %p79
      %p86 = scmp.eq.s32.totalorder %s30, 1
      %p87 = por %p85, %p86
      %p88 = scmp.ne.s32.totalorder %s80, %s83
      %p89 = scmp.eq.s32.totalorder %s30, 0
      %p90 = por %p88, %p89
      %p91 = scmp.ne.s32.totalorder %s80, %s83
      %p92 = scmp.eq.s32.totalorder %s35, 1
      %p93 = por %p91, %p92
      %p94 = scmp.ne.s32.totalorder %s83, %s84
      %p95 = scmp.eq.s32.totalorder %s35, 0
      %p96 = por %p94, %p95
      %p97 = scmp.ne.s32.totalorder %s83, %s84
      %p98 = scmp.eq.s32.totalorder %s36, 1
      %p99 = por %p97, %p98
      %p101 = scmp.ne.s32.totalorder %s84, %s100
      %p102 = scmp.eq.s32.totalorder %s36, 0
      %p103 = por %p101, %p102
      %s105 = sadd.s32 %s104, 1
      %p108 = scmp.eq.s32.totalorder %s30, 1
      %p109 = scmp.ne.s32.totalorder %s104, %s106
      %p110 = scmp.eq.s32.totalorder %s30, 0
      %p111 = por %p109, %p110
      %p112 = scmp.ne.s32.totalorder %s104, %s106
      %p113 = scmp.eq.s32.totalorder %s35, 1
      %p114 = por %p112, %p113
      %p115 = scmp.ne.s32.totalorder %s106, %s107
      %p116 = scmp.eq.s32.totalorder %s35, 0
      %p117 = por %p115, %p116
      %p118 = scmp.ne.s32.totalorder %s106, %s107
      %p119 = scmp.eq.s32.totalorder %s36, 1
      %p120 = por %p118, %p119
      %p122 = scmp.ne.s32.totalorder %s107, %s121
      %p123 = scmp.eq.s32.totalorder %s36, 0
      %p124 = por %p122, %p123
      %s126 = sadd.s32 %s125, 1
      %p129 = scmp.eq.s32.totalorder %s30, 1
      %p130 = scmp.ne.s32.totalorder %s125, %s127
      %p131 = scmp.eq.s32.totalorder %s30, 0
      %p132 = por %p130, %p131
      %p133 = scmp.ne.s32.totalorder %s125, %s127
      %p134 = scmp.eq.s32.totalorder %s35, 1
      %p135 = por %p133, %p134
      %p136 = scmp.ne.s32.totalorder %s127, %s128
      %p137 = scmp.eq.s32.totalorder %s35, 0
      %p138 = por %p136, %p137
      %p139 = scmp.ne.s32.totalorder %s127, %s128
      %p140 = scmp.eq.s32.totalorder %s36, 1
      %p141 = por %p139, %p140
      %p143 = scmp.ne.s32.totalorder %s128, %s142
      %p144 = scmp.eq.s32.totalorder %s36, 0
      %p145 = por %p143, %p144
      %s147 = sadd.s32 %s146, 1
      %p150 = scmp.eq.s32.totalorder %s30, 1
      %p151 = scmp.ne.s32.totalorder %s146, %s148
      %p152 = scmp.eq.s32.totalorder %s30, 0
      %p153 = por %p151, %p152
      %p154 = scmp.ne.s32.totalorder %s146, %s148
      %p155 = scmp.eq.s32.totalorder %s35, 1
      %p156 = por %p154, %p155
      %p157 = scmp.ne.s32.totalorder %s148, %s149
      %p158 = scmp.eq.s32.totalorder %s35, 0
      %p159 = por %p157, %p158
      %p160 = scmp.ne.s32.totalorder %s148, %s149
      %p161 = scmp.eq.s32.totalorder %s36, 1
      %p162 = por %p160, %p161
      %p164 = scmp.ne.s32.totalorder %s149, %s163
      %p165 = scmp.eq.s32.totalorder %s36, 0
      %p166 = por %p164, %p165
      %s168 = sadd.s32 %s167, 1
      %p171 = scmp.eq.s32.totalorder %s30, 1
      %p172 = scmp.ne.s32.totalorder %s167, %s169
      %p173 = scmp.eq.s32.totalorder %s30, 0
      %p174 = por %p172, %p173
      %p175 = scmp.ne.s32.totalorder %s167, %s169
      %p176 = scmp.eq.s32.totalorder %s35, 1
      %p177 = por %p175, %p176
      %p178 = scmp.ne.s32.totalorder %s169, %s170
      %p179 = scmp.eq.s32.totalorder %s35, 0
      %p180 = por %p178, %p179
      %p181 = scmp.ne.s32.totalorder %s169, %s170
      %p182 = scmp.eq.s32.totalorder %s36, 1
      %p183 = por %p181, %p182
      %p185 = scmp.ne.s32.totalorder %s170, %s184
      %p186 = scmp.eq.s32.totalorder %s36, 0
      %p187 = por %p185, %p186
      %s189 = sadd.s32 %s188, 1
      %p192 = scmp.eq.s32.totalorder %s30, 1
      %p193 = scmp.ne.s32.totalorder %s188, %s190
      %p194 = scmp.eq.s32.totalorder %s30, 0
      %p195 = por %p193, %p194
      %p196 = scmp.ne.s32.totalorder %s188, %s190
      %p197 = scmp.eq.s32.totalorder %s35, 1
      %p198 = por %p196, %p197
      %p199 = scmp.ne.s32.totalorder %s190, %s191
      %p200 = scmp.eq.s32.totalorder %s35, 0
      %p201 = por %p199, %p200
      %p202 = scmp.ne.s32.totalorder %s190, %s191
      %p203 = scmp.eq.s32.totalorder %s36, 1
      %p204 = por %p202, %p203
      %p206 = scmp.ne.s32.totalorder %s191, %s205
      %p207 = scmp.eq.s32.totalorder %s36, 0
      %p208 = por %p206, %p207
      %s210 = sadd.s32 %s209, 1
      %p213 = scmp.eq.s32.totalorder %s30, 1
      %p214 = scmp.ne.s32.totalorder %s209, %s211
      %p215 = scmp.eq.s32.totalorder %s30, 0
      %p216 = por %p214, %p215
      %p217 = scmp.ne.s32.totalorder %s209, %s211
      %p218 = scmp.eq.s32.totalorder %s35, 1
      %p219 = por %p217, %p218
      %p220 = scmp.ne.s32.totalorder %s211, %s212
      %p221 = scmp.eq.s32.totalorder %s35, 0
      %p222 = por %p220, %p221
      %p223 = scmp.ne.s32.totalorder %s211, %s212
      %p224 = scmp.eq.s32.totalorder %s36, 1
      %p225 = por %p223, %p224
      %p227 = scmp.ne.s32.totalorder %s212, %s226
      %p228 = scmp.eq.s32.totalorder %s36, 0
      %p229 = por %p227, %p228
      %s231 = sadd.s32 %s230, 1
      %p234 = scmp.eq.s32.totalorder %s30, 1
      %p235 = scmp.ne.s32.totalorder %s230, %s232
      %p236 = scmp.eq.s32.totalorder %s30, 0
      %p237 = por %p235, %p236
      %p238 = scmp.ne.s32.totalorder %s230, %s232
      %p239 = scmp.eq.s32.totalorder %s35, 1
      %p240 = por %p238, %p239
      %p241 = scmp.ne.s32.totalorder %s232, %s233
      %p242 = scmp.eq.s32.totalorder %s35, 0
      %p243 = por %p241, %p242
      %p244 = scmp.ne.s32.totalorder %s232, %s233
      %p245 = scmp.eq.s32.totalorder %s36, 1
      %p246 = por %p244, %p245
      %p248 = scmp.ne.s32.totalorder %s233, %s247
      %p249 = scmp.eq.s32.totalorder %s36, 0
      %p250 = por %p248, %p249
      %s252 = sadd.s32 %s251, 1
      %p255 = scmp.eq.s32.totalorder %s30, 1
      %p256 = scmp.ne.s32.totalorder %s251, %s253
      %p257 = scmp.eq.s32.totalorder %s30, 0
      %p258 = por %p256, %p257
      %p259 = scmp.ne.s32.totalorder %s251, %s253
      %p260 = scmp.eq.s32.totalorder %s35, 1
      %p261 = por %p259, %p260
      %p262 = scmp.ne.s32.totalorder %s253, %s254
      %p263 = scmp.eq.s32.totalorder %s35, 0
      %p264 = por %p262, %p263
      %p265 = scmp.ne.s32.totalorder %s253, %s254
      %p266 = scmp.eq.s32.totalorder %s36, 1
      %p267 = por %p265, %p266
      %p269 = scmp.ne.s32.totalorder %s254, %s268
      %p270 = scmp.eq.s32.totalorder %s36, 0
      %p271 = por %p269, %p270
      %s273 = sadd.s32 %s272, 1
      %p276 = scmp.eq.s32.totalorder %s30, 1
      %p277 = scmp.ne.s32.totalorder %s272, %s274
      %p278 = scmp.eq.s32.totalorder %s30, 0
      %p279 = por %p277, %p278
      %p280 = scmp.ne.s32.totalorder %s272, %s274
      %p281 = scmp.eq.s32.totalorder %s35, 1
      %p282 = por %p280, %p281
      %p283 = scmp.ne.s32.totalorder %s274, %s275
      %p284 = scmp.eq.s32.totalorder %s35, 0
      %p285 = por %p283, %p284
      %p286 = scmp.ne.s32.totalorder %s274, %s275
      %p287 = scmp.eq.s32.totalorder %s36, 1
      %p288 = por %p286, %p287
      %p290 = scmp.ne.s32.totalorder %s275, %s289
      %p291 = scmp.eq.s32.totalorder %s36, 0
      %p292 = por %p290, %p291
      %s293 = ssub.s32 %s37, %s49
      %s294 = ssub.s32 %s38, %s45
      %s295 = sor.u32 %s293, %s294
      %p296 = scmp.eq.s32.totalorder %s295, 0
      %s298 = sadd.s32 %s297, 1
      %s299 = scalar_select %p296, %s297, %s298
      %p302 = pneg %p296
      %p303 = scmp.eq.s32.totalorder %s30, 1
      %p304 = por %p302, %p303
      %p305 = scmp.ne.s32.totalorder %s297, %s300
      %p306 = scmp.eq.s32.totalorder %s30, 0
      %p307 = por %p305, %p306
      %p308 = scmp.ne.s32.totalorder %s297, %s300
      %p309 = scmp.eq.s32.totalorder %s35, 1
      %p310 = por %p308, %p309
      %p311 = scmp.ne.s32.totalorder %s300, %s301
      %p312 = scmp.eq.s32.totalorder %s35, 0
      %p313 = por %p311, %p312
      %p314 = scmp.ne.s32.totalorder %s300, %s301
      %p315 = scmp.eq.s32.totalorder %s36, 1
      %p316 = por %p314, %p315
      %p318 = scmp.ne.s32.totalorder %s301, %s317
      %p319 = scmp.eq.s32.totalorder %s36, 0
      %p320 = por %p318, %p319
      %s321 = ssub.s32 %s37, %s49
      %s322 = ssub.s32 %s38, %s45
      %s323 = sor.u32 %s321, %s322
      %p324 = scmp.eq.s32.totalorder %s323, 0
      %s326 = sadd.s32 %s325, 1
      %s327 = scalar_select %p324, %s325, %s326
      %p330 = pneg %p324
      %p331 = scmp.eq.s32.totalorder %s30, 1
      %p332 = por %p330, %p331
      %p333 = scmp.ne.s32.totalorder %s325, %s328
      %p334 = scmp.eq.s32.totalorder %s30, 0
      %p335 = por %p333, %p334
      %p336 = scmp.ne.s32.totalorder %s325, %s328
      %p337 = scmp.eq.s32.totalorder %s35, 1
      %p338 = por %p336, %p337
      %p339 = scmp.ne.s32.totalorder %s328, %s329
      %p340 = scmp.eq.s32.totalorder %s35, 0
      %p341 = por %p339, %p340
      %p342 = scmp.ne.s32.totalorder %s328, %s329
      %p343 = scmp.eq.s32.totalorder %s36, 1
      %p344 = por %p342, %p343
      %p346 = scmp.ne.s32.totalorder %s329, %s345
      %p347 = scmp.eq.s32.totalorder %s36, 0
      %p348 = por %p346, %p347
      %p349 = scmp.le.s32.totalorder 1, %s30
      %p350 = scmp.lt.s32.totalorder %s30, 3
      %p351 = pnand %p349, %p350
      %p352 = pneg %p351
      // Predicated region
      $region9: #{tpu_custom_call.1} parent=5 // pred_check
        _
      $region10: #{tpu_custom_call.1} parent=5 // pred_check_branch
        %354 = sbr.rel (%p351) target = $region12
      $region11: #{tpu_custom_call.1} parent=5 // pred_region
        %s355 = ssub.s32 %s30, 1
        // Predicated region
        $region13: #{tpu_custom_call.1} parent=11 // pred_check
          %p356 = pneg %p117
        $region14: #{tpu_custom_call.1} parent=11 // pred_check_branch
          %358 = sbr.rel (%p356) target = $region16
        $region15: #{tpu_custom_call.1} parent=11 // pred_region
          _
        $region16: #{tpu_custom_call.1} parent=11 // pred_fallthru
          _
        // Predicated region
        $region17: #{tpu_custom_call.1} parent=11 // pred_check
          %p359 = pneg %p138
        $region18: #{tpu_custom_call.1} parent=11 // pred_check_branch
          %361 = sbr.rel (%p359) target = $region20
        $region19: #{tpu_custom_call.1} parent=11 // pred_region
          _
        $region20: #{tpu_custom_call.1} parent=11 // pred_fallthru
          _
        // Predicated region
        $region21: #{tpu_custom_call.1} parent=11 // pred_check
          %p362 = pneg %p159
        $region22: #{tpu_custom_call.1} parent=11 // pred_check_branch
          %364 = sbr.rel (%p362) target = $region24
        $region23: #{tpu_custom_call.1} parent=11 // pred_region
          _
        $region24: #{tpu_custom_call.1} parent=11 // pred_fallthru
          _
        // Predicated region
        $region25: #{tpu_custom_call.1} parent=11 // pred_check
          %p365 = pneg %p180
        $region26: #{tpu_custom_call.1} parent=11 // pred_check_branch
          %367 = sbr.rel (%p365) target = $region28
        $region27: #{tpu_custom_call.1} parent=11 // pred_region
          _
        $region28: #{tpu_custom_call.1} parent=11 // pred_fallthru
          _
        // Predicated region
        $region29: #{tpu_custom_call.1} parent=11 // pred_check
          %p368 = pneg %p201
        $region30: #{tpu_custom_call.1} parent=11 // pred_check_branch
          %370 = sbr.rel (%p368) target = $region32
        $region31: #{tpu_custom_call.1} parent=11 // pred_region
          _
        $region32: #{tpu_custom_call.1} parent=11 // pred_fallthru
          _
        // Predicated region
        $region33: #{tpu_custom_call.1} parent=11 // pred_check
          %p371 = pneg %p222
        $region34: #{tpu_custom_call.1} parent=11 // pred_check_branch
          %373 = sbr.rel (%p371) target = $region36
        $region35: #{tpu_custom_call.1} parent=11 // pred_region
          _
        $region36: #{tpu_custom_call.1} parent=11 // pred_fallthru
          _
        // Predicated region
        $region37: #{tpu_custom_call.1} parent=11 // pred_check
          %p374 = pneg %p243
        $region38: #{tpu_custom_call.1} parent=11 // pred_check_branch
          %376 = sbr.rel (%p374) target = $region40
        $region39: #{tpu_custom_call.1} parent=11 // pred_region
          _
        $region40: #{tpu_custom_call.1} parent=11 // pred_fallthru
          _
        // Predicated region
        $region41: #{tpu_custom_call.1} parent=11 // pred_check
          %p377 = pneg %p264
        $region42: #{tpu_custom_call.1} parent=11 // pred_check_branch
          %379 = sbr.rel (%p377) target = $region44
        $region43: #{tpu_custom_call.1} parent=11 // pred_region
          _
        $region44: #{tpu_custom_call.1} parent=11 // pred_fallthru
          _
        // Predicated region
        $region45: #{tpu_custom_call.1} parent=11 // pred_check
          %p380 = pneg %p285
        $region46: #{tpu_custom_call.1} parent=11 // pred_check_branch
          %382 = sbr.rel (%p380) target = $region48
        $region47: #{tpu_custom_call.1} parent=11 // pred_region
          _
        $region48: #{tpu_custom_call.1} parent=11 // pred_fallthru
          _
      $region12: #{tpu_custom_call.1} parent=5 // pred_fallthru
        _
      %p383 = scmp.lt.s32.totalorder %s30, 2
      // Predicated region
      $region49: #{tpu_custom_call.1} parent=5 // pred_check
        %p384 = pneg %p383
      $region50: #{tpu_custom_call.1} parent=5 // pred_check_branch
        %386 = sbr.rel (%p384) target = $region52
      $region51: #{tpu_custom_call.1} parent=5 // pred_region
        // Predicated region
        $region53: #{tpu_custom_call.1} parent=51 // pred_check
          %p387 = pneg %p64
        $region54: #{tpu_custom_call.1} parent=51 // pred_check_branch
          %389 = sbr.rel (%p387) target = $region56
        $region55: #{tpu_custom_call.1} parent=51 // pred_region
          %s390 = sand.u32 %s54, 1
          %s391 = scalar_lea.sflag [#allocation4], %s390
          %s392 = sand.u32 %s54, 1
          %s393 = smul.addr %s392, 8
          %s394 = scalar_lea.vmem [#allocation3], %s393
          %396 = vsyncadd %s391, 0
          %s397 = sadd.s32 %s38, %s37
          %s398 = smul.addr %s397, 8
          %s399 = scalar_lea.hbm %s0, %s398
          %s401 = sshll.u32 %s399, 4
          %s402 = int_to_ptr.hbm [resolvable:$true] %s401
          %s403 = sshll.u32 %s394, 4
          %s404 = int_to_ptr.vmem [resolvable:$true] %s403
          %406 = dma.hbm_to_vmem [thread:$0]  %s402, 128, %s404, %s391
        $region56: #{tpu_custom_call.1} parent=51 // pred_fallthru
          _
        // Predicated region
        $region57: #{tpu_custom_call.1} parent=51 // pred_check
          %p407 = pneg %p90
        $region58: #{tpu_custom_call.1} parent=51 // pred_check_branch
          %409 = sbr.rel (%p407) target = $region60
        $region59: #{tpu_custom_call.1} parent=51 // pred_region
          %s410 = sand.u32 %s80, 1
          %s411 = scalar_lea.sflag [#allocation7], %s410
          %s412 = sand.u32 %s80, 1
          %s413 = smul.addr %s412, 8
          %s414 = scalar_lea.vmem [#allocation6], %s413
          %416 = vsyncadd %s411, 0
          %s417 = smul.addr %s37, 8
          %s418 = scalar_lea.hbm %s1, %s417
          %s420 = sshll.u32 %s418, 4
          %s421 = int_to_ptr.hbm [resolvable:$true] %s420
          %s422 = sshll.u32 %s414, 4
          %s423 = int_to_ptr.vmem [resolvable:$true] %s422
          %425 = dma.hbm_to_vmem [thread:$0]  %s421, 128, %s423, %s411
        $region60: #{tpu_custom_call.1} parent=51 // pred_fallthru
          _
      $region52: #{tpu_custom_call.1} parent=5 // pred_fallthru
        _
      %p426 = scmp.le.s32.totalorder 1, %s30
      %p427 = scmp.lt.s32.totalorder %s30, 3
      %p428 = pnand %p426, %p427
      %p429 = pneg %p428
      // Predicated region
      $region61: #{tpu_custom_call.1} parent=5 // pred_check
        _
      $region62: #{tpu_custom_call.1} parent=5 // pred_check_branch
        %431 = sbr.rel (%p428) target = $region64
      $region63: #{tpu_custom_call.1} parent=5 // pred_region
        %s432 = ssub.s32 %s30, 1
        %s433 = sand.u32 %s57, 1
        %s434 = scalar_lea.sflag [#allocation4], %s433
        %s435 = sand.u32 %s57, 1
        %s436 = smul.addr %s435, 8
        %s437 = scalar_lea.vmem [#allocation3], %s436
        // Predicated region
        $region65: #{tpu_custom_call.1} parent=63 // pred_check
          %p438 = pneg %p70
        $region66: #{tpu_custom_call.1} parent=63 // pred_check_branch
          %440 = sbr.rel (%p438) target = $region68
        $region67: #{tpu_custom_call.1} parent=63 // pred_region
          %442 = dma.done %s434, 128
        $region68: #{tpu_custom_call.1} parent=63 // pred_fallthru
          _
        %s443 = sand.u32 %s83, 1
        %s444 = scalar_lea.sflag [#allocation7], %s443
        %s445 = sand.u32 %s83, 1
        %s446 = smul.addr %s445, 8
        %s447 = scalar_lea.vmem [#allocation6], %s446
        // Predicated region
        $region69: #{tpu_custom_call.1} parent=63 // pred_check
          %p448 = pneg %p96
        $region70: #{tpu_custom_call.1} parent=63 // pred_check_branch
          %450 = sbr.rel (%p448) target = $region72
        $region71: #{tpu_custom_call.1} parent=63 // pred_region
          %452 = dma.done %s444, 128
        $region72: #{tpu_custom_call.1} parent=63 // pred_fallthru
          _
        %s453 = sand.u32 %s57, 1
        %s454 = scalar_lea.sflag [#allocation4], %s453
        %s455 = sand.u32 %s57, 1
        %s456 = smul.addr %s455, 8
        %s457 = scalar_lea.vmem [#allocation3], %s456
        %p458 = pneg %p70
        %p459 = pneg %p67
        %s460 = sand.u32 %s83, 1
        %s461 = scalar_lea.sflag [#allocation7], %s460
        %s462 = sand.u32 %s83, 1
        %s463 = smul.addr %s462, 8
        %s464 = scalar_lea.vmem [#allocation6], %s463
        %p465 = pneg %p96
        %p466 = pneg %p93
        %p467 = pneg %p117
        %p468 = pneg %p114
        %p469 = pneg %p138
        %p470 = pneg %p135
        %p471 = pneg %p159
        %p472 = pneg %p156
        %p473 = pneg %p180
        %p474 = pneg %p177
        %p475 = pneg %p201
        %p476 = pneg %p198
        %p477 = pneg %p222
        %p478 = pneg %p219
        %p479 = pneg %p243
        %p480 = pneg %p240
        %p481 = pneg %p264
        %p482 = pneg %p261
        %p483 = pneg %p285
        %p484 = pneg %p282
        %p485 = pneg %p313
        %p486 = pneg %p310
        %s487 = sand.u32 %s300, 1
        %s488 = scalar_lea.sflag [#allocation5], %s487
        %s489 = sand.u32 %s300, 1
        %s490 = smul.addr %s489, 32
        %s491 = scalar_lea.vmem [#allocation8], %s490
        %p492 = pneg %p341
        %p493 = pneg %p338
        %p494 = scmp.lt.s32.totalorder %s39, 1
        %s495 = scalar_select %p494, %s39, 1
        %p496 = scmp.lt.s32.totalorder %s40, 0
        %s497 = scalar_select %p496, %s40, 0
        %s498 = sadd.s32 %s497, %s495
        %s499 = smul.addr %s498, 8
        %s500 = scalar_lea.vmem %s12, %s499
        %p501 = scmp.lt.s32.totalorder %s39, 1
        %s502 = scalar_select %p501, %s39, 1
        %p503 = scmp.lt.s32.totalorder %s40, 0
        %s504 = scalar_select %p503, %s40, 0
        %s505 = sadd.s32 %s504, %s502
        %s506 = smul.addr %s505, 8
        %s507 = scalar_lea.vmem %s12, %s506
        %v508 = vld [vmem:[%s437] sm:$0xff]
        %v509 = vld [vmem:[%s447] sm:$0xff]
        %v510 = vld [vmem:[%s2] sm:$0xff]
        %v511 = vld [vmem:[%s2 + $0x8] sm:$0xff]
        %v512 = vld [vmem:[%s2 + $0x10] sm:$0xff]
        %v513 = vld [vmem:[%s2 + $0x18] sm:$0xff]
        %v514 = vld [vmem:[%s3] sm:$0x1]
        %v516 = vperm.slane %v514, 0
        %vm518 = vcmask 261120
        %v520 = vsel %vm518, %v508, 0
        %522 = vmatpush.msra.mxu0 0.0
        %523 = vmatpush.msra.mxu0 0.0
        %524 = vmatpush.msra.mxu0 0.0
        %525 = vmatpush.msra.mxu0 0.0
        %526 = vmatpush.msra.mxu0 0.0
        %527 = vmatpush.msra.mxu0 0.0
        %528 = vmatpush.msra.mxu0 0.0
        %529 = vmatpush.msra.mxu0 0.0
        %530 = vmatpush.msra.mxu0 0.0
        %531 = vmatpush.msra.mxu0 0.0
        %532 = vmatpush.msra.mxu0 0.0
        %533 = vmatpush.msra.mxu0 0.0
        %534 = vmatpush.msra.mxu0 %v513
        %535 = vmatpush.msra.mxu0 %v512
        %536 = vmatpush.msra.mxu0 %v511
        %537 = vmatpush.msra.mxu0 %v510
        %538 = vmatmul.f32.gmra.mxu0 %v520
        %v539 = vpop.f32.mrf.mxu0
        %v540 = vadd.f32 %v516, %v539
        %541 = vdwg.mxu0
        %v542 = vld [vmem:[%s4] sm:$0xff]
        %v543 = vld [vmem:[%s4 + $0x8] sm:$0xff]
        %v544 = vld [vmem:[%s4 + $0x10] sm:$0xff]
        %v545 = vld [vmem:[%s4 + $0x18] sm:$0xff]
        %v546 = vld [vmem:[%s5] sm:$0x1]
        %v548 = vperm.slane %v546, 0
        %v551 = vsel %vm518, %v509, 0
        %553 = vmatpush.msra.mxu0 0.0
        %554 = vmatpush.msra.mxu0 0.0
        %555 = vmatpush.msra.mxu0 0.0
        %556 = vmatpush.msra.mxu0 0.0
        %557 = vmatpush.msra.mxu0 0.0
        %558 = vmatpush.msra.mxu0 0.0
        %559 = vmatpush.msra.mxu0 0.0
        %560 = vmatpush.msra.mxu0 0.0
        %561 = vmatpush.msra.mxu0 0.0
        %562 = vmatpush.msra.mxu0 0.0
        %563 = vmatpush.msra.mxu0 0.0
        %564 = vmatpush.msra.mxu0 0.0
        %565 = vmatpush.msra.mxu0 %v545
        %566 = vmatpush.msra.mxu0 %v544
        %567 = vmatpush.msra.mxu0 %v543
        %568 = vmatpush.msra.mxu0 %v542
        %569 = vmatmul.f32.gmra.mxu0 %v551
        %v570 = vpop.f32.mrf.mxu0
        %v571 = vadd.f32 %v548, %v570
        %572 = vdwg.mxu0
        %v573 = vld [vmem:[%s6] sm:$0x1]
        %v575 = vrot.slane %v540, 1
        %v576 = vrot.slane %v540, 2
        %v577 = vrot.slane %v540, 3
        %v578 = vrot.slane %v540, 4
        %v579 = vrot.slane %v540, 5
        %v580 = vrot.slane %v540, 6
        %v581 = vrot.slane %v540, 7
        %v582 = vperm.slane %v540, 0
        %v583 = vperm.slane %v575, 0
        %v584 = vperm.slane %v576, 0
        %v585 = vperm.slane %v577, 0
        %v586 = vperm.slane %v578, 0
        %v587 = vperm.slane %v579, 0
        %v588 = vperm.slane %v580, 0
        %v589 = vperm.slane %v581, 0
        %v598 = vadd.f32 %v582, %v571
        %v599 = vadd.f32 %v583, %v571
        %v600 = vadd.f32 %v584, %v571
        %v601 = vadd.f32 %v585, %v571
        %v602 = vadd.f32 %v586, %v571
        %v603 = vadd.f32 %v587, %v571
        %v604 = vadd.f32 %v588, %v571
        %v605 = vadd.f32 %v589, %v571
        %v606 = vtanh.pop %v598
        %v607 = vtanh.pop %v599
        %v608 = vtanh.pop %v600
        %v609 = vtanh.pop %v601
        %v610 = vtanh.pop %v602
        %v611 = vtanh.pop %v603
        %v612 = vtanh.pop %v604
        %v613 = vtanh.pop %v605
        %v615 = vperm.slane %v573, 0
        %v617 = vmul.f32 %v606, %v615
        %v618 = vmul.f32 %v607, %v615
        %v619 = vmul.f32 %v608, %v615
        %v620 = vmul.f32 %v609, %v615
        %v621 = vmul.f32 %v610, %v615
        %v622 = vmul.f32 %v611, %v615
        %v623 = vmul.f32 %v612, %v615
        %v624 = vmul.f32 %v613, %v615
        %v625 = vsel %vm518, %v617, 0.0
        %626 = vadd.xlane.f32.xlu0 %v625
        %v627 = vpop.xlane.xlu0 %626
        %v628 = vsel %vm518, %v618, 0.0
        %629 = vadd.xlane.f32.xlu0 %v628
        %v630 = vpop.xlane.xlu0 %629
        %v631 = vsel %vm518, %v619, 0.0
        %632 = vadd.xlane.f32.xlu0 %v631
        %v633 = vpop.xlane.xlu0 %632
        %v634 = vsel %vm518, %v620, 0.0
        %635 = vadd.xlane.f32.xlu0 %v634
        %v636 = vpop.xlane.xlu0 %635
        %v637 = vsel %vm518, %v621, 0.0
        %638 = vadd.xlane.f32.xlu0 %v637
        %v639 = vpop.xlane.xlu0 %638
        %v640 = vsel %vm518, %v622, 0.0
        %641 = vadd.xlane.f32.xlu0 %v640
        %v642 = vpop.xlane.xlu0 %641
        %v643 = vsel %vm518, %v623, 0.0
        %644 = vadd.xlane.f32.xlu0 %v643
        %v645 = vpop.xlane.xlu0 %644
        %v646 = vsel %vm518, %v624, 0.0
        %647 = vadd.xlane.f32.xlu0 %v646
        %v648 = vpop.xlane.xlu0 %647
        %v657 = vlaneseq
        %v658 = vand.u32 %v657, 127
        %v659 = vperm.slane %v627, %v658
        %v660 = vperm.slane %v630, %v658
        %v661 = vperm.slane %v633, %v658
        %v662 = vperm.slane %v636, %v658
        %v663 = vperm.slane %v639, %v658
        %v664 = vperm.slane %v642, %v658
        %v665 = vperm.slane %v645, %v658
        %v666 = vperm.slane %v648, %v658
        %vm667 = vcmask 1041409
        %v668 = vsel %vm667, %v660, %v659
        %vm669 = vcmask 1042434
        %v670 = vsel %vm669, %v661, %v668
        %vm671 = vcmask 1043459
        %v672 = vsel %vm671, %v662, %v670
        %vm673 = vcmask 1044484
        %v674 = vsel %vm673, %v663, %v672
        %vm675 = vcmask 1045509
        %v676 = vsel %vm675, %v664, %v674
        %vm677 = vcmask 1046534
        %v678 = vsel %vm677, %v665, %v676
        %vm679 = vcmask 1047559
        %v680 = vsel %vm679, %v666, %v678
        %vm682 = vcmask 64512
        %683 = vst.msk [vmem:[%s491] sm:$0xff] %vm682, %v680
        %684 = vrot.lane.b32.xlu0 %v615, 32
        %v685 = vpop.permute.xlu0 %684
        %v687 = vmul.f32 %v606, %v685
        %v688 = vmul.f32 %v607, %v685
        %v689 = vmul.f32 %v608, %v685
        %v690 = vmul.f32 %v609, %v685
        %v691 = vmul.f32 %v610, %v685
        %v692 = vmul.f32 %v611, %v685
        %v693 = vmul.f32 %v612, %v685
        %v694 = vmul.f32 %v613, %v685
        %703 = vrot.lane.b32.xlu0 %v687, 96
        %v704 = vpop.permute.xlu0 %703
        %705 = vrot.lane.b32.xlu0 %v688, 96
        %v706 = vpop.permute.xlu0 %705
        %707 = vrot.lane.b32.xlu0 %v689, 96
        %v708 = vpop.permute.xlu0 %707
        %709 = vrot.lane.b32.xlu0 %v690, 96
        %v710 = vpop.permute.xlu0 %709
        %711 = vrot.lane.b32.xlu0 %v691, 96
        %v712 = vpop.permute.xlu0 %711
        %713 = vrot.lane.b32.xlu0 %v692, 96
        %v714 = vpop.permute.xlu0 %713
        %715 = vrot.lane.b32.xlu0 %v693, 96
        %v716 = vpop.permute.xlu0 %715
        %717 = vrot.lane.b32.xlu0 %v694, 96
        %v718 = vpop.permute.xlu0 %717
        %v727 = vsel %vm518, %v704, 0.0
        %728 = vadd.xlane.f32.xlu0 %v727
        %v729 = vpop.xlane.xlu0 %728
        %v730 = vsel %vm518, %v706, 0.0
        %731 = vadd.xlane.f32.xlu0 %v730
        %v732 = vpop.xlane.xlu0 %731
        %v733 = vsel %vm518, %v708, 0.0
        %734 = vadd.xlane.f32.xlu0 %v733
        %v735 = vpop.xlane.xlu0 %734
        %v736 = vsel %vm518, %v710, 0.0
        %737 = vadd.xlane.f32.xlu0 %v736
        %v738 = vpop.xlane.xlu0 %737
        %v739 = vsel %vm518, %v712, 0.0
        %740 = vadd.xlane.f32.xlu0 %v739
        %v741 = vpop.xlane.xlu0 %740
        %v742 = vsel %vm518, %v714, 0.0
        %743 = vadd.xlane.f32.xlu0 %v742
        %v744 = vpop.xlane.xlu0 %743
        %v745 = vsel %vm518, %v716, 0.0
        %746 = vadd.xlane.f32.xlu0 %v745
        %v747 = vpop.xlane.xlu0 %746
        %v748 = vsel %vm518, %v718, 0.0
        %749 = vadd.xlane.f32.xlu0 %v748
        %v750 = vpop.xlane.xlu0 %749
        %v759 = vperm.slane %v729, %v658
        %v760 = vperm.slane %v732, %v658
        %v761 = vperm.slane %v735, %v658
        %v762 = vperm.slane %v738, %v658
        %v763 = vperm.slane %v741, %v658
        %v764 = vperm.slane %v744, %v658
        %v765 = vperm.slane %v747, %v658
        %v766 = vperm.slane %v750, %v658
        %v767 = vsel %vm667, %v760, %v759
        %v768 = vsel %vm669, %v761, %v767
        %v769 = vsel %vm671, %v762, %v768
        %v770 = vsel %vm673, %v763, %v769
        %v771 = vsel %vm675, %v764, %v770
        %v772 = vsel %vm677, %v765, %v771
        %v773 = vsel %vm679, %v766, %v772
        %s775 = scalar_lea.vmem %s491, 8 [#allocation8]
        %776 = vst.msk [vmem:[%s775] sm:$0xff] %vm682, %v773
        %777 = vrot.lane.b32.xlu0 %v615, 64
        %v778 = vpop.permute.xlu0 %777
        %v780 = vmul.f32 %v606, %v778
        %v781 = vmul.f32 %v607, %v778
        %v782 = vmul.f32 %v608, %v778
        %v783 = vmul.f32 %v609, %v778
        %v784 = vmul.f32 %v610, %v778
        %v785 = vmul.f32 %v611, %v778
        %v786 = vmul.f32 %v612, %v778
        %v787 = vmul.f32 %v613, %v778
        %796 = vrot.lane.b32.xlu0 %v780, 64
        %v797 = vpop.permute.xlu0 %796
        %798 = vrot.lane.b32.xlu0 %v781, 64
        %v799 = vpop.permute.xlu0 %798
        %800 = vrot.lane.b32.xlu0 %v782, 64
        %v801 = vpop.permute.xlu0 %800
        %802 = vrot.lane.b32.xlu0 %v783, 64
        %v803 = vpop.permute.xlu0 %802
        %804 = vrot.lane.b32.xlu0 %v784, 64
        %v805 = vpop.permute.xlu0 %804
        %806 = vrot.lane.b32.xlu0 %v785, 64
        %v807 = vpop.permute.xlu0 %806
        %808 = vrot.lane.b32.xlu0 %v786, 64
        %v809 = vpop.permute.xlu0 %808
        %810 = vrot.lane.b32.xlu0 %v787, 64
        %v811 = vpop.permute.xlu0 %810
        %v820 = vsel %vm518, %v797, 0.0
        %821 = vadd.xlane.f32.xlu0 %v820
        %v822 = vpop.xlane.xlu0 %821
        %v823 = vsel %vm518, %v799, 0.0
        %824 = vadd.xlane.f32.xlu0 %v823
        %v825 = vpop.xlane.xlu0 %824
        %v826 = vsel %vm518, %v801, 0.0
        %827 = vadd.xlane.f32.xlu0 %v826
        %v828 = vpop.xlane.xlu0 %827
        %v829 = vsel %vm518, %v803, 0.0
        %830 = vadd.xlane.f32.xlu0 %v829
        %v831 = vpop.xlane.xlu0 %830
        %v832 = vsel %vm518, %v805, 0.0
        %833 = vadd.xlane.f32.xlu0 %v832
        %v834 = vpop.xlane.xlu0 %833
        %v835 = vsel %vm518, %v807, 0.0
        %836 = vadd.xlane.f32.xlu0 %v835
        %v837 = vpop.xlane.xlu0 %836
        %v838 = vsel %vm518, %v809, 0.0
        %839 = vadd.xlane.f32.xlu0 %v838
        %v840 = vpop.xlane.xlu0 %839
        %v841 = vsel %vm518, %v811, 0.0
        %842 = vadd.xlane.f32.xlu0 %v841
        %v843 = vpop.xlane.xlu0 %842
        %v852 = vperm.slane %v822, %v658
        %v853 = vperm.slane %v825, %v658
        %v854 = vperm.slane %v828, %v658
        %v855 = vperm.slane %v831, %v658
        %v856 = vperm.slane %v834, %v658
        %v857 = vperm.slane %v837, %v658
        %v858 = vperm.slane %v840, %v658
        %v859 = vperm.slane %v843, %v658
        %v860 = vsel %vm667, %v853, %v852
        %v861 = vsel %vm669, %v854, %v860
        %v862 = vsel %vm671, %v855, %v861
        %v863 = vsel %vm673, %v856, %v862
        %v864 = vsel %vm675, %v857, %v863
        %v865 = vsel %vm677, %v858, %v864
        %v866 = vsel %vm679, %v859, %v865
        %s868 = scalar_lea.vmem %s491, 16 [#allocation8]
        %869 = vst.msk [vmem:[%s868] sm:$0xff] %vm682, %v866
        %870 = vrot.lane.b32.xlu0 %v615, 96
        %v871 = vpop.permute.xlu0 %870
        %v873 = vmul.f32 %v606, %v871
        %v874 = vmul.f32 %v607, %v871
        %v875 = vmul.f32 %v608, %v871
        %v876 = vmul.f32 %v609, %v871
        %v877 = vmul.f32 %v610, %v871
        %v878 = vmul.f32 %v611, %v871
        %v879 = vmul.f32 %v612, %v871
        %v880 = vmul.f32 %v613, %v871
        %889 = vrot.lane.b32.xlu0 %v873, 32
        %v890 = vpop.permute.xlu0 %889
        %891 = vrot.lane.b32.xlu0 %v874, 32
        %v892 = vpop.permute.xlu0 %891
        %893 = vrot.lane.b32.xlu0 %v875, 32
        %v894 = vpop.permute.xlu0 %893
        %895 = vrot.lane.b32.xlu0 %v876, 32
        %v896 = vpop.permute.xlu0 %895
        %897 = vrot.lane.b32.xlu0 %v877, 32
        %v898 = vpop.permute.xlu0 %897
        %899 = vrot.lane.b32.xlu0 %v878, 32
        %v900 = vpop.permute.xlu0 %899
        %901 = vrot.lane.b32.xlu0 %v879, 32
        %v902 = vpop.permute.xlu0 %901
        %903 = vrot.lane.b32.xlu0 %v880, 32
        %v904 = vpop.permute.xlu0 %903
        %v913 = vsel %vm518, %v890, 0.0
        %914 = vadd.xlane.f32.xlu0 %v913
        %v915 = vpop.xlane.xlu0 %914
        %v916 = vsel %vm518, %v892, 0.0
        %917 = vadd.xlane.f32.xlu0 %v916
        %v918 = vpop.xlane.xlu0 %917
        %v919 = vsel %vm518, %v894, 0.0
        %920 = vadd.xlane.f32.xlu0 %v919
        %v921 = vpop.xlane.xlu0 %920
        %v922 = vsel %vm518, %v896, 0.0
        %923 = vadd.xlane.f32.xlu0 %v922
        %v924 = vpop.xlane.xlu0 %923
        %v925 = vsel %vm518, %v898, 0.0
        %926 = vadd.xlane.f32.xlu0 %v925
        %v927 = vpop.xlane.xlu0 %926
        %v928 = vsel %vm518, %v900, 0.0
        %929 = vadd.xlane.f32.xlu0 %v928
        %v930 = vpop.xlane.xlu0 %929
        %v931 = vsel %vm518, %v902, 0.0
        %932 = vadd.xlane.f32.xlu0 %v931
        %v933 = vpop.xlane.xlu0 %932
        %v934 = vsel %vm518, %v904, 0.0
        %935 = vadd.xlane.f32.xlu0 %v934
        %v936 = vpop.xlane.xlu0 %935
        %v945 = vperm.slane %v915, %v658
        %v946 = vperm.slane %v918, %v658
        %v947 = vperm.slane %v921, %v658
        %v948 = vperm.slane %v924, %v658
        %v949 = vperm.slane %v927, %v658
        %v950 = vperm.slane %v930, %v658
        %v951 = vperm.slane %v933, %v658
        %v952 = vperm.slane %v936, %v658
        %v953 = vsel %vm667, %v946, %v945
        %v954 = vsel %vm669, %v947, %v953
        %v955 = vsel %vm671, %v948, %v954
        %v956 = vsel %vm673, %v949, %v955
        %v957 = vsel %vm675, %v950, %v956
        %v958 = vsel %vm677, %v951, %v957
        %v959 = vsel %vm679, %v952, %v958
        %s961 = scalar_lea.vmem %s491, 24 [#allocation8]
        %962 = vst.msk [vmem:[%s961] sm:$0xff] %vm682, %v959
        %v963 = vld [vmem:[%s7] sm:$0xff]
        %v964 = vld [vmem:[%s7 + $0x8] sm:$0xff]
        %v965 = vld [vmem:[%s7 + $0x10] sm:$0xff]
        %v966 = vld [vmem:[%s7 + $0x18] sm:$0xff]
        %v967 = vld [vmem:[%s8] sm:$0x1]
        %v969 = vperm.slane %v967, 0
        %971 = vmatpush.msra.mxu0 0.0
        %972 = vmatpush.msra.mxu0 0.0
        %973 = vmatpush.msra.mxu0 0.0
        %974 = vmatpush.msra.mxu0 0.0
        %975 = vmatpush.msra.mxu0 0.0
        %976 = vmatpush.msra.mxu0 0.0
        %977 = vmatpush.msra.mxu0 0.0
        %978 = vmatpush.msra.mxu0 0.0
        %979 = vmatpush.msra.mxu0 0.0
        %980 = vmatpush.msra.mxu0 0.0
        %981 = vmatpush.msra.mxu0 0.0
        %982 = vmatpush.msra.mxu0 0.0
        %983 = vmatpush.msra.mxu0 %v966
        %984 = vmatpush.msra.mxu0 %v965
        %985 = vmatpush.msra.mxu0 %v964
        %986 = vmatpush.msra.mxu0 %v963
        %987 = vmatmul.f32.gmra.mxu0 %v520
        %v988 = vpop.f32.mrf.mxu0
        %v989 = vadd.f32 %v969, %v988
        %990 = vdwg.mxu0
        %v991 = vtanh.pop %v989
        %v992 = vld [vmem:[%s9] sm:$0xff]
        %v993 = vld [vmem:[%s9 + $0x8] sm:$0xff]
        %v994 = vld [vmem:[%s9 + $0x10] sm:$0xff]
        %v995 = vld [vmem:[%s9 + $0x18] sm:$0xff]
        %v996 = vld [vmem:[%s9 + $0x20] sm:$0xff]
        %v997 = vld [vmem:[%s9 + $0x28] sm:$0xff]
        %v998 = vld [vmem:[%s9 + $0x30] sm:$0xff]
        %v999 = vld [vmem:[%s9 + $0x38] sm:$0xff]
        %v1000 = vld [vmem:[%s9 + $0x40] sm:$0xff]
        %v1001 = vld [vmem:[%s9 + $0x48] sm:$0xff]
        %v1002 = vld [vmem:[%s9 + $0x50] sm:$0xff]
        %v1003 = vld [vmem:[%s9 + $0x58] sm:$0xff]
        %v1004 = vld [vmem:[#allocation2] sm:$0x1]
        %v1006 = vperm.slane %v1004, 0
        %1007 = vset.pattern.permute.xlu0 0
        %1008 = vperm.xlu0 %1007, %v1006
        %v1009 = vpop.permute.xlu0 %1008
        %vm1011 = vcmask 785408
        %v1013 = vsel %vm1011, %v991, 0
        %1015 = vmatpush.msra.mxu0 0.0
        %1016 = vmatpush.msra.mxu0 0.0
        %1017 = vmatpush.msra.mxu0 0.0
        %1018 = vmatpush.msra.mxu0 0.0
        %1019 = vmatpush.msra.mxu0 %v1003
        %1020 = vmatpush.msra.mxu0 %v1002
        %1021 = vmatpush.msra.mxu0 %v1001
        %1022 = vmatpush.msra.mxu0 %v1000
        %1023 = vmatpush.msra.mxu0 %v999
        %1024 = vmatpush.msra.mxu0 %v998
        %1025 = vmatpush.msra.mxu0 %v997
        %1026 = vmatpush.msra.mxu0 %v996
        %1027 = vmatpush.msra.mxu0 %v995
        %1028 = vmatpush.msra.mxu0 %v994
        %1029 = vmatpush.msra.mxu0 %v993
        %1030 = vmatpush.msra.mxu0 %v992
        %1031 = vmatmul.f32.gmra.mxu0 %v1013
        %v1032 = vpop.f32.mrf.mxu0
        %v1033 = vadd.f32 %v1009, %v1032
        %1034 = vdwg.mxu0
        %vm1035 = vcmask 23552
        %1036 = vst.msk [vmem:[%s507] sm:$0xff] %vm1035, %v1033
        %s1037 = sand.u32 %s300, 1
        %s1038 = scalar_lea.sflag [#allocation5], %s1037
        %s1039 = sand.u32 %s300, 1
        %s1040 = smul.addr %s1039, 32
        %s1041 = scalar_lea.vmem [#allocation8], %s1040
        %p1042 = scmp.lt.s32.totalorder %s39, 1
        %s1043 = scalar_select %p1042, %s39, 1
        %p1044 = scmp.lt.s32.totalorder %s40, 0
        %s1045 = scalar_select %p1044, %s40, 0
        %s1046 = sadd.s32 %s1045, %s1043
        %s1047 = smul.addr %s1046, 8
        %s1048 = scalar_lea.vmem %s12, %s1047
        // Predicated region
        $region73: #{tpu_custom_call.1} parent=63 // pred_check
          %p1049 = pneg %p310
        $region74: #{tpu_custom_call.1} parent=63 // pred_check_branch
          %1051 = sbr.rel (%p1049) target = $region76
        $region75: #{tpu_custom_call.1} parent=63 // pred_region
          %1053 = vsyncadd %s1038, 0
          %s1054 = smul.addr %s39, 4
          %s1055 = sadd.s32 %s40, %s1054
          %s1056 = smul.addr %s1055, 8
          %s1057 = scalar_lea.hbm %s11, %s1056
          %s1058 = sshll.u32 %s1041, 4
          %s1059 = int_to_ptr.vmem [resolvable:$true] %s1058
          %s1060 = sshll.u32 %s1057, 4
          %s1061 = int_to_ptr.hbm [resolvable:$true] %s1060
          %1066 = dma.vmem_to_hbm [thread:$0]  %s1059, 512, %s1061, %s1038, 128, 128, 8
        $region76: #{tpu_custom_call.1} parent=63 // pred_fallthru
          _
        // Predicated region
        $region77: #{tpu_custom_call.1} parent=63 // pred_check
          %p1067 = pneg %p338
        $region78: #{tpu_custom_call.1} parent=63 // pred_check_branch
          %1069 = sbr.rel (%p1067) target = $region80
        $region79: #{tpu_custom_call.1} parent=63 // pred_region
          _
        $region80: #{tpu_custom_call.1} parent=63 // pred_fallthru
          _
      $region64: #{tpu_custom_call.1} parent=5 // pred_fallthru
        _
      %p1070 = scmp.le.s32.totalorder 2, %s30
      // Predicated region
      $region81: #{tpu_custom_call.1} parent=5 // pred_check
        %p1071 = pneg %p1070
      $region82: #{tpu_custom_call.1} parent=5 // pred_check_branch
        %1073 = sbr.rel (%p1071) target = $region84
      $region83: #{tpu_custom_call.1} parent=5 // pred_region
        %s1074 = ssub.s32 %s30, 2
        // Predicated region
        $region85: #{tpu_custom_call.1} parent=83 // pred_check
          %p1075 = pneg %p316
        $region86: #{tpu_custom_call.1} parent=83 // pred_check_branch
          %1077 = sbr.rel (%p1075) target = $region88
        $region87: #{tpu_custom_call.1} parent=83 // pred_region
          %s1078 = sand.u32 %s301, 1
          %s1079 = scalar_lea.sflag [#allocation5], %s1078
          %s1080 = sand.u32 %s301, 1
          %s1081 = smul.addr %s1080, 32
          %s1082 = scalar_lea.vmem [#allocation8], %s1081
          %1084 = dma.done %s1079, 512
        $region88: #{tpu_custom_call.1} parent=83 // pred_fallthru
          _
        // Predicated region
        $region89: #{tpu_custom_call.1} parent=83 // pred_check
          %p1085 = pneg %p344
        $region90: #{tpu_custom_call.1} parent=83 // pred_check_branch
          %1087 = sbr.rel (%p1085) target = $region92
        $region91: #{tpu_custom_call.1} parent=83 // pred_region
          %p1088 = scmp.lt.s32.totalorder %s41, 1
          %s1089 = scalar_select %p1088, %s41, 1
          %p1090 = scmp.lt.s32.totalorder %s42, 0
          %s1091 = scalar_select %p1090, %s42, 0
          %s1092 = sadd.s32 %s1091, %s1089
          %s1093 = smul.addr %s1092, 8
          %s1094 = scalar_lea.vmem %s12, %s1093
        $region92: #{tpu_custom_call.1} parent=83 // pred_fallthru
          _
      $region84: #{tpu_custom_call.1} parent=5 // pred_fallthru
        _
    $region6: #{tpu_custom_call.1} parent=1 // loop_footer
      %s34 = sadd.s32 1, %s30
    $region7: #{tpu_custom_call.1} parent=1 // loop_footer_branch
      %29 = sbr.rel target = $region3
    $region8: #{tpu_custom_call.1} parent=1 // loop_exit
      _
    %1095 = vsyncpa [#allocation4], 1
    %s1096 = scalar_lea.sflag [#allocation4], 1
    %1097 = vsyncpa %s1096, 1
    %1098 = vsyncpa [#allocation7], 1
    %s1099 = scalar_lea.sflag [#allocation7], 1
    %1100 = vsyncpa %s1099, 1
    %1101 = vsyncpa [#allocation5], 1
    %s1102 = scalar_lea.sflag [#allocation5], 1
    %1103 = vsyncpa %s1102, 1

</llo_original>
